<compile_context>
chip_gen: v5e
topology: v5e:2x2
jax: 0.10.0
libtpu: 0.0.40
codegen_flags: <defaults>
</compile_context>

<pallas_src>
import functools

import jax
import jax.numpy as jnp
from jax import lax
from jax.experimental import pallas as pl
from jax.experimental.pallas import tpu as pltpu

MARGIN = 0.0  # module default


def _round_up(x, m):
    return (x + m - 1) // m * m


def _contrastive_tile_kernel(im_ref, ssel_ref, dcol_ref, drow_ref, out_ref, *,
                             batch, row_tile, col_tile, margin):
    """One (row_tile, col_tile) block of the (B, B) score matrix."""
    i = pl.program_id(0)   # row-tile index  ("parallel")
    j = pl.program_id(1)   # col-tile index  ("arbitrary" reduction)

    @pl.when(j == 0)
    def _():
        out_ref[...] = jnp.zeros_like(out_ref)

    # scores tile on the MXU; native operand dtype, f32 accumulation.
    scores = lax.dot_general(
        im_ref[...], ssel_ref[...],
        dimension_numbers=(((1,), (1,)), ((), ())),
        preferred_element_type=jnp.float32,
    )                                                   # (tm, tn) f32

    d1 = dcol_ref[...]                                  # (tm, 1)  diag[i]
    d2 = drow_ref[...]                                  # (1, tn)  diag[j]

    cost_s = jnp.maximum(margin + scores - d1, 0.0)
    cost_im = jnp.maximum(margin + scores - d2, 0.0)

    # Per-axis ids: diagonal and padded rows/cols removed via broadcast
    # compares (no full (tm, tn) iota generation).  Padding mask is required:
    # padded scores are 0 and relu(0 - diag) can be > 0 when diag < 0.
    rid = i * row_tile + lax.broadcasted_iota(jnp.int32, (row_tile, 1), 0)
    cid = j * col_tile + lax.broadcasted_iota(jnp.int32, (1, col_tile), 1)
    keep = (rid != cid) & (rid < batch) & (cid < batch)  # (tm, tn) via bcast

    combined = jnp.where(keep, cost_s + cost_im, 0.0)

    # Sublane-only reduce (VPU adds + small XLU); keeps the accumulation and
    # the resident-output store lane-dense.  Cross-lane reduce is deferred to
    # the wrapper (tiny (ni, 1, tn) array).
    partial = jnp.sum(combined, axis=0, keepdims=True)   # (1, tn)
    out_ref[...] += partial[None]                        # (1, 1, tn)


def _choose_tiles(B, D, itemsize):
    """Pick (row_tile, col_tile) under a VMEM budget safe on v5e/v6e/v7x."""
    budget = 24 * 1024 * 1024            # double-buffered operand budget

    # Column (lane) tile: always a multiple of 128.  Hold the whole s_sel
    # operand as one block when it fits comfortably -> loaded from HBM once.
    col_full = _round_up(B, 128)
    if 2 * col_full * D * itemsize <= budget // 2:
        tn = col_full
    else:
        tn = 256

    # Row tile: as big as the remaining budget allows (amortizes streamed
    # s_sel columns), capped at 512; keep >= 2 row tiles once B > 128 so the
    # "parallel" axis can use both v7x TensorCores.
    rem = max(0, budget - 2 * tn * D * itemsize)
    tm_cap = max(8, min(512, (rem // max(1, 2 * D * itemsize)) // 8 * 8))
    Bp8 = _round_up(B, 8)
    if Bp8 <= 128:
        tm = min(Bp8, tm_cap)
    else:
        tm = min(_round_up((Bp8 + 1) // 2, 8), tm_cap)
    return tm, tn


def contrastive_loss(im, s, mask, margin=MARGIN):
    """im: (B, D); s: (1, T, B, D); mask: (B, T). Returns scalar float32."""
    T = s.shape[1]
    B, D = im.shape

    # Last-valid-token gather straight from (T, B, D): no transpose.
    # (len-1) % T wraps an all-zero mask row to T-1, matching PyTorch's
    # temp[i][-1] negative-index behavior.
    lengths = jnp.sum(mask.astype(jnp.int32), axis=1)
    idx = (lengths - 1) % T
    s_tbd = s[0]                                               # (T, B, D)
    idx_b = jnp.broadcast_to(idx[None, :, None], (1, B, D))
    s_sel = jnp.take_along_axis(s_tbd, idx_b, axis=0)[0]       # (B, D)

    # scores diagonal = row-wise dot im[i]·s_sel[i] (tiny, computed once).
    diag = jnp.sum(im.astype(jnp.float32) * s_sel.astype(jnp.float32), axis=1)

    itemsize = im.dtype.itemsize
    tm, tn = _choose_tiles(B, D, itemsize)
    Bp_m = _round_up(B, tm)
    Bp_n = _round_up(B, tn)
    ni, nj = Bp_m // tm, Bp_n // tn

    im_p = jnp.pad(im, ((0, Bp_m - B), (0, 0))) if Bp_m != B else im
    ssel_p = jnp.pad(s_sel, ((0, Bp_n - B), (0, 0))) if Bp_n != B else s_sel
    dcol = jnp.pad(diag, (0, Bp_m - B))[:, None]               # (Bp_m, 1)
    drow = jnp.pad(diag, (0, Bp_n - B))[None, :]               # (1, Bp_n)

    kernel = functools.partial(
        _contrastive_tile_kernel,
        batch=B, row_tile=tm, col_tile=tn, margin=float(margin))

    # VMEM footprint (double-buffered blocks, lane/sublane padded) -> limit.
    need = 2 * (tm + tn) * D * itemsize          # im + s_sel blocks
    need += 2 * (tm * 128 + 8 * tn) * 4          # dcol / drow blocks
    need += 2 * 8 * tn * 4                       # resident output block
    vmem_limit = int(min(max(need * 5 // 4 + (4 << 20), 32 << 20), 48 << 20))

    sel_bytes = (1 if nj == 1 else ni) * Bp_n * D * itemsize
    cost = pl.CostEstimate(
        flops=2 * B * B * D,
        transcendentals=0,
        bytes_accessed=int(Bp_m * D * itemsize + sel_bytes
                           + 4 * (Bp_m + Bp_n) + 4 * ni * tn))

    partials = pl.pallas_call(
        kernel,
        out_shape=jax.ShapeDtypeStruct((ni, 1, tn), jnp.float32),
        grid=(ni, nj),
        in_specs=[
            pl.BlockSpec((tm, D), lambda i, j: (i, 0)),    # im row tile
            pl.BlockSpec((tn, D), lambda i, j: (j, 0)),    # s_sel col tile
            pl.BlockSpec((tm, 1), lambda i, j: (i, 0)),    # diag for rows
            pl.BlockSpec((1, tn), lambda i, j: (0, j)),    # diag for cols
        ],
        out_specs=pl.BlockSpec((1, 1, tn), lambda i, j: (i, 0, 0)),
        compiler_params=pltpu.CompilerParams(
            dimension_semantics=("parallel", "arbitrary"),
            vmem_limit_bytes=vmem_limit),
        cost_estimate=cost,
    )(im_p, ssel_p, dcol, drow)

    # mean(cost_s) + mean(cost_im): both means are over B*B entries.
    return jnp.sum(partials) / float(B * B)


def _reference_loss(im, s, mask, margin=MARGIN):
    """Pure-JAX reference mirroring the PyTorch module."""
    s_btd = jnp.transpose(s[0], (1, 0, 2))
    B, T, D = s_btd.shape
    idx = (jnp.sum(mask.astype(jnp.int32), axis=1) - 1) % T
    s_sel = jnp.take_along_axis(
        s_btd, jnp.broadcast_to(idx[:, None, None], (B, 1, D)), axis=1)[:, 0, :]
    scores = jnp.dot(im.astype(jnp.float32), s_sel.astype(jnp.float32).T)
    diag = jnp.diagonal(scores)
    cost_s = jnp.maximum(margin + scores - diag[:, None], 0.0)
    cost_im = jnp.maximum(margin + scores - diag[None, :], 0.0)
    eye = jnp.eye(B, dtype=bool)
    cost_s = jnp.where(eye, 0.0, cost_s)
    cost_im = jnp.where(eye, 0.0, cost_im)
    return jnp.mean(cost_s) + jnp.mean(cost_im)


if __name__ == "__main__":
    key = jax.random.PRNGKey(0)
    B, T, D = 8, 8, 32

    k_im, k_s, k_len = jax.random.split(key, 3)
    im = jax.random.normal(k_im, (B, D), dtype=jnp.float32)
    s = jax.random.normal(k_s, (1, T, B, D), dtype=jnp.float32)

    # mask: lengths in [1, T], first `len` positions are 1
    lengths = jax.random.randint(k_len, (B,), 1, T + 1)
    mask = (jnp.arange(T)[None, :] < lengths[:, None]).astype(jnp.float32)

    loss = contrastive_loss(im, s, mask)
    jax.block_until_ready(loss)

    ref = _reference_loss(im, s, mask)
    assert jnp.allclose(loss, ref, rtol=2e-2, atol=2e-2), (loss, ref)

    print("KERNEL_OK")
</pallas_src>

<mosaic_0001>
module attributes {stable_mosaic.version = 11 : i64} {
  func.func @_contrastive_tile_kernel(%arg0: i32, %arg1: i32, %arg2: memref<8x32xf32, #tpu.memory_space<vmem>>, %arg3: memref<128x32xf32, #tpu.memory_space<vmem>>, %arg4: memref<8x1xf32, #tpu.memory_space<vmem>>, %arg5: memref<1x128xf32, #tpu.memory_space<vmem>>, %arg6: memref<1x1x128xf32, #tpu.memory_space<vmem>>) attributes {dimension_semantics = [#tpu.dimension_semantics<parallel>, #tpu.dimension_semantics<arbitrary>], iteration_bounds = array<i64: 1, 1>, scalar_prefetch = 0 : i64, scratch_operands = 0 : i64, tpu.core_type = #tpu.core_type<tc>, window_params = [{transform_indices = @transform_0, window_bounds = array<i64: 8, 32>}, {transform_indices = @transform_1, window_bounds = array<i64: 128, 32>}, {transform_indices = @transform_2, window_bounds = array<i64: 8, 1>}, {transform_indices = @transform_3, window_bounds = array<i64: 1, 128>}, {transform_indices = @transform_4, window_bounds = array<i64: 1, 1, 128>}]} {
    %c0_i32 = arith.constant 0 : i32
    %0 = arith.cmpi eq, %arg1, %c0_i32 : i32
    %1 = arith.extui %0 : i1 to i32
    %c0_i32_0 = arith.constant 0 : i32
    %2 = arith.cmpi ne, %1, %c0_i32_0 : i32
    scf.if %2 {
      %cst_22 = arith.constant 0.000000e+00 : f32
      %48 = vector.broadcast %cst_22 : f32 to vector<1x1x128xf32>
      %c0_23 = arith.constant 0 : index
      %c0_24 = arith.constant 0 : index
      %c0_25 = arith.constant 0 : index
      %49 = vector.load %arg6[%c0_23, %c0_24, %c0_25] : memref<1x1x128xf32, #tpu.memory_space<vmem>>, vector<1x1x128xf32>
      tpu.vector_store %arg6[%c0_23, %c0_24, %c0_25], %48 {strides = array<i32>} : memref<1x1x128xf32, #tpu.memory_space<vmem>>, vector<1x1x128xf32>,
    } else {
    }
    %c0 = arith.constant 0 : index
    %c0_1 = arith.constant 0 : index
    %3 = vector.load %arg2[%c0, %c0_1] : memref<8x32xf32, #tpu.memory_space<vmem>>, vector<8x32xf32>
    %c0_2 = arith.constant 0 : index
    %c0_3 = arith.constant 0 : index
    %4 = vector.load %arg3[%c0_2, %c0_3] : memref<128x32xf32, #tpu.memory_space<vmem>>, vector<128x32xf32>
    %cst = arith.constant dense<0.000000e+00> : vector<8x128xf32>
    %5 = tpu.matmul %3, %4, %cst {dimension_numbers = #tpu.dot_dimension_numbers<[1], [1], [0], [0], [0, 0, 1, 0], [], []>} : vector<8x32xf32>, vector<128x32xf32>, vector<8x128xf32> -> vector<8x128xf32>
    %c0_4 = arith.constant 0 : index
    %c0_5 = arith.constant 0 : index
    %6 = vector.load %arg4[%c0_4, %c0_5] : memref<8x1xf32, #tpu.memory_space<vmem>>, vector<8x1xf32>
    %c0_6 = arith.constant 0 : index
    %c0_7 = arith.constant 0 : index
    %7 = vector.load %arg5[%c0_6, %c0_7] : memref<1x128xf32, #tpu.memory_space<vmem>>, vector<1x128xf32>
    %cst_8 = arith.constant 0.000000e+00 : f32
    %8 = vector.broadcast %cst_8 : f32 to vector<8x128xf32>
    %9 = arith.addf %8, %5 : vector<8x128xf32>
    %10 = vector.broadcast %6 : vector<8x1xf32> to vector<8x128xf32>
    %11 = arith.subf %9, %10 : vector<8x128xf32>
    %cst_9 = arith.constant 0.000000e+00 : f32
    %12 = vector.broadcast %cst_9 : f32 to vector<8x128xf32>
    %13 = arith.maximumf %11, %12 : vector<8x128xf32>
    %cst_10 = arith.constant 0.000000e+00 : f32
    %14 = vector.broadcast %cst_10 : f32 to vector<8x128xf32>
    %15 = arith.addf %14, %5 : vector<8x128xf32>
    %16 = vector.broadcast %7 : vector<1x128xf32> to vector<8x128xf32>
    %17 = arith.subf %15, %16 : vector<8x128xf32>
    %cst_11 = arith.constant 0.000000e+00 : f32
    %18 = vector.broadcast %cst_11 : f32 to vector<8x128xf32>
    %19 = arith.maximumf %17, %18 : vector<8x128xf32>
    %c8_i32 = arith.constant 8 : i32
    %20 = arith.muli %arg0, %c8_i32 : i32
    %21 = tpu.iota {dimensions = array<i32: 0>} : vector<8x1xi32>
    %22 = vector.broadcast %20 : i32 to vector<8x1xi32>
    %23 = arith.addi %22, %21 : vector<8x1xi32>
    %c128_i32 = arith.constant 128 : i32
    %24 = arith.muli %arg1, %c128_i32 : i32
    %25 = tpu.iota {dimensions = array<i32: 1>} : vector<1x128xi32>
    %26 = vector.broadcast %24 : i32 to vector<1x128xi32>
    %27 = arith.addi %26, %25 : vector<1x128xi32>
    %28 = vector.broadcast %23 : vector<8x1xi32> to vector<8x128xi32>
    %29 = vector.broadcast %27 : vector<1x128xi32> to vector<8x128xi32>
    %30 = arith.cmpi ne, %28, %29 : vector<8x128xi32>
    %c8_i32_12 = arith.constant 8 : i32
    %31 = vector.broadcast %c8_i32_12 : i32 to vector<8x1xi32>
    %32 = arith.cmpi slt, %23, %31 : vector<8x1xi32>
    %33 = vector.broadcast %32 : vector<8x1xi1> to vector<8x128xi1>
    %34 = arith.andi %30, %33 : vector<8x128xi1>
    %c8_i32_13 = arith.constant 8 : i32
    %35 = vector.broadcast %c8_i32_13 : i32 to vector<1x128xi32>
    %36 = arith.cmpi slt, %27, %35 : vector<1x128xi32>
    %37 = vector.broadcast %36 : vector<1x128xi1> to vector<8x128xi1>
    %38 = arith.andi %34, %37 : vector<8x128xi1>
    %39 = arith.addf %13, %19 : vector<8x128xf32>
    %cst_14 = arith.constant 0.000000e+00 : f32
    %40 = vector.broadcast %cst_14 : f32 to vector<8x128xf32>
    %41 = arith.select %38, %39, %40 : vector<8x128xi1>, vector<8x128xf32>
    %cst_15 = arith.constant dense<0.000000e+00> : vector<128xf32>
    %42 = vector.multi_reduction <add>, %41, %cst_15 [0] : vector<8x128xf32> to vector<128xf32>
    %43 = vector.shape_cast %42 : vector<128xf32> to vector<1x128xf32>
    %c0_16 = arith.constant 0 : index
    %c0_17 = arith.constant 0 : index
    %c0_18 = arith.constant 0 : index
    %44 = vector.load %arg6[%c0_16, %c0_17, %c0_18] : memref<1x1x128xf32, #tpu.memory_space<vmem>>, vector<1x1x128xf32>
    %45 = vector.shape_cast %43 : vector<1x128xf32> to vector<1x1x128xf32>
    %46 = arith.addf %44, %45 : vector<1x1x128xf32>
    %c0_19 = arith.constant 0 : index
    %c0_20 = arith.constant 0 : index
    %c0_21 = arith.constant 0 : index
    %47 = vector.load %arg6[%c0_19, %c0_20, %c0_21] : memref<1x1x128xf32, #tpu.memory_space<vmem>>, vector<1x1x128xf32>
    tpu.vector_store %arg6[%c0_19, %c0_20, %c0_21], %46 {strides = array<i32>} : memref<1x1x128xf32, #tpu.memory_space<vmem>>, vector<1x1x128xf32>,
    return
  }
  func.func @transform_0(%arg0: i32, %arg1: i32) -> (i32, i32) {
    %c0_i32 = arith.constant 0 : i32
    %c0_i32_0 = arith.constant 0 : i32
    return %arg0, %c0_i32 : i32, i32
  }
  func.func @transform_1(%arg0: i32, %arg1: i32) -> (i32, i32) {
    %c0_i32 = arith.constant 0 : i32
    %c0_i32_0 = arith.constant 0 : i32
    return %arg1, %c0_i32 : i32, i32
  }
  func.func @transform_2(%arg0: i32, %arg1: i32) -> (i32, i32) {
    %c0_i32 = arith.constant 0 : i32
    %c0_i32_0 = arith.constant 0 : i32
    return %arg0, %c0_i32 : i32, i32
  }
  func.func @transform_3(%arg0: i32, %arg1: i32) -> (i32, i32) {
    %c0_i32 = arith.constant 0 : i32
    %c0_i32_0 = arith.constant 0 : i32
    return %c0_i32, %arg1 : i32, i32
  }
  func.func @transform_4(%arg0: i32, %arg1: i32) -> (i32, i32, i32) {
    %c0_i32 = arith.constant 0 : i32
    %c0_i32_0 = arith.constant 0 : i32
    %c0_i32_1 = arith.constant 0 : i32
    return %arg0, %c0_i32, %c0_i32_0 : i32, i32, i32
  }
}

</mosaic_0001>

<llo_original>
// kernel: tpu_custom_call.1
$region0: #{tpu_custom_call.1}
  #allocation0 [shape = 'u32[]', space=smem, size = 0x4, offset = 0x4, fixed_abs, tag = 'smem constant byte address 0x4 - core index']
  #allocation1 [shape = 'u32[72,128]{1,0:T(1,128)}', space=vmem, size = 0x9000, scoped, tag = 'internal scratch']
  %s0 = inlined_call_operand.vmem [shape: f32[8,32], index: 0, kind: input, shape index: {}]
  %s1 = inlined_call_operand.vmem [shape: f32[128,32], index: 1, kind: input, shape index: {}]
  %s2 = inlined_call_operand.vmem [shape: f32[8,1], index: 2, kind: input, shape index: {}]
  %s3 = inlined_call_operand.vmem [shape: f32[1,128], index: 3, kind: input, shape index: {}]
  %s4 = inlined_call_operand.hbm [shape: f32[1,1,128], index: 4, kind: output, shape index: {}]
  %s5 = sld [smem:[#allocation0]]
  $region30: #{tpu_custom_call.1} parent=0
    _
  %s7 = ssub.s32 1, %s5
  %s8 = scalar_select 0, %s7, %s5
  $region1: #{tpu_custom_call.1} parent=0
    #allocation2 [shape = 'u8[512]{0}', space=vmem, size = 0x400, scoped, tag = 'output window, operand 0, single buffered']
    #allocation3 [shape = 's32[1]{0}', space=sflag, size = 0x4, scoped, tag = 'scoped memory for tpu_custom_call.1']
    %9 = vsyncpa [#allocation3], 0
    // Predicated region
    $region2: #{tpu_custom_call.1} parent=1 // pred_check
      _
    $region3: #{tpu_custom_call.1} parent=1 // pred_check_branch
      %11 = sbr.rel (0) target = $region5
    $region4: #{tpu_custom_call.1} parent=1 // pred_region
      _
    $region5: #{tpu_custom_call.1} parent=1 // pred_fallthru
      _
    // Predicated region
    $region6: #{tpu_custom_call.1} parent=1 // pred_check
      _
    $region7: #{tpu_custom_call.1} parent=1 // pred_check_branch
      %13 = sbr.rel (0) target = $region9
    $region8: #{tpu_custom_call.1} parent=1 // pred_region
      _
    $region9: #{tpu_custom_call.1} parent=1 // pred_fallthru
      _
    // Predicated region
    $region10: #{tpu_custom_call.1} parent=1 // pred_check
      _
    $region11: #{tpu_custom_call.1} parent=1 // pred_check_branch
      %15 = sbr.rel (0) target = $region13
    $region12: #{tpu_custom_call.1} parent=1 // pred_region
      _
    $region13: #{tpu_custom_call.1} parent=1 // pred_fallthru
      _
    // Predicated region
    $region14: #{tpu_custom_call.1} parent=1 // pred_check
      _
    $region15: #{tpu_custom_call.1} parent=1 // pred_check_branch
      %17 = sbr.rel (0) target = $region17
    $region16: #{tpu_custom_call.1} parent=1 // pred_region
      _
    $region17: #{tpu_custom_call.1} parent=1 // pred_fallthru
      _
    %p18 = scmp.eq.s32.totalorder 0, 0
    // Predicated region
    $region18: #{tpu_custom_call.1} parent=1 // pred_check
      %p19 = pneg %p18
    $region19: #{tpu_custom_call.1} parent=1 // pred_check_branch
      %21 = sbr.rel (%p19) target = $region21
    $region20: #{tpu_custom_call.1} parent=1 // pred_region
      %22 = vst [vmem:[#allocation2] sm:$0x1] 0.0
    $region21: #{tpu_custom_call.1} parent=1 // pred_fallthru
      _
    %v23 = vld [vmem:[%s0] sm:$0xff]
    %v24 = vld [vmem:[%s1] sm:$0xff]
    %v25 = vld [vmem:[%s1 + $0x8] sm:$0xff]
    %v26 = vld [vmem:[%s1 + $0x10] sm:$0xff]
    %v27 = vld [vmem:[%s1 + $0x18] sm:$0xff]
    %v28 = vld [vmem:[%s1 + $0x20] sm:$0xff]
    %v29 = vld [vmem:[%s1 + $0x28] sm:$0xff]
    %v30 = vld [vmem:[%s1 + $0x30] sm:$0xff]
    %v31 = vld [vmem:[%s1 + $0x38] sm:$0xff]
    %v32 = vld [vmem:[%s1 + $0x40] sm:$0xff]
    %v33 = vld [vmem:[%s1 + $0x48] sm:$0xff]
    %v34 = vld [vmem:[%s1 + $0x50] sm:$0xff]
    %v35 = vld [vmem:[%s1 + $0x58] sm:$0xff]
    %v36 = vld [vmem:[%s1 + $0x60] sm:$0xff]
    %v37 = vld [vmem:[%s1 + $0x68] sm:$0xff]
    %v38 = vld [vmem:[%s1 + $0x70] sm:$0xff]
    %v39 = vld [vmem:[%s1 + $0x78] sm:$0xff]
    %v40 = vld [vmem:[%s2] sm:$0xff]
    %v41 = vld [vmem:[%s3] sm:$0x1]
    %vm42 = vcmask 261120
    %v44 = vsel %vm42, %v23, 0
    %v47 = vsel %vm42, %v24, 0
    %v50 = vsel %vm42, %v25, 0
    %v53 = vsel %vm42, %v26, 0
    %v56 = vsel %vm42, %v27, 0
    %v59 = vsel %vm42, %v28, 0
    %v62 = vsel %vm42, %v29, 0
    %v65 = vsel %vm42, %v30, 0
    %v68 = vsel %vm42, %v31, 0
    %v71 = vsel %vm42, %v32, 0
    %v74 = vsel %vm42, %v33, 0
    %v77 = vsel %vm42, %v34, 0
    %v80 = vsel %vm42, %v35, 0
    %v83 = vsel %vm42, %v36, 0
    %v86 = vsel %vm42, %v37, 0
    %v89 = vsel %vm42, %v38, 0
    %v92 = vsel %vm42, %v39, 0
    %94 = vmatpush.xpose.msra.mxu0 %v92
    %95 = vmatpush.xpose.msra.mxu0 %v89
    %96 = vmatpush.xpose.msra.mxu0 %v86
    %97 = vmatpush.xpose.msra.mxu0 %v83
    %98 = vmatpush.xpose.msra.mxu0 %v80
    %99 = vmatpush.xpose.msra.mxu0 %v77
    %100 = vmatpush.xpose.msra.mxu0 %v74
    %101 = vmatpush.xpose.msra.mxu0 %v71
    %102 = vmatpush.xpose.msra.mxu0 %v68
    %103 = vmatpush.xpose.msra.mxu0 %v65
    %104 = vmatpush.xpose.msra.mxu0 %v62
    %105 = vmatpush.xpose.msra.mxu0 %v59
    %106 = vmatpush.xpose.msra.mxu0 %v56
    %107 = vmatpush.xpose.msra.mxu0 %v53
    %108 = vmatpush.xpose.msra.mxu0 %v50
    %109 = vmatpush.xpose.msra.mxu0 %v47
    %110 = vmatmul.f32.gmra.mxu0 %v44
    %v111 = vpop.f32.mrf.mxu0
    %v112 = vadd.f32 0.0, %v111
    %113 = vdwg.mxu0
    %115 = vset.pattern.permute.xlu0 0
    %116 = vperm.xlu0 %115, %v40
    %v117 = vpop.permute.xlu0 %116
    %v119 = vsub.f32 %v112, %v117
    %v120 = vmax.f32 %v119, 0.0
    %v122 = vperm.slane %v41, 0
    %v124 = vsub.f32 %v112, %v122
    %v125 = vmax.f32 %v124, 0.0
    %s126 = smul.u32 0, 8
    %v127 = vlaneseq
    %v128 = vshrl.u32 %v127, 7
    %v129 = vstv %s126
    %v130 = vadd.s32 %v129, %v128
    %s131 = smul.u32 0, 128
    %v132 = vlaneseq
    %v133 = vand.u32 %v132, 127
    %v134 = vstv %s131
    %v135 = vadd.s32 %v134, %v133
    %vm136 = vcmp.ne.s32.totalorder %v130, %v135
    %vm137 = vcmp.lt.s32.totalorder %v130, 8
    %v138 = vsel %vm137, 1, 0
    %vm139 = vcmp.eq.s32.totalorder %v138, 1
    %vm140 = vmand %vm136, %vm139
    %vm141 = vcmp.lt.s32.totalorder %v135, 8
    %v142 = vsel %vm141, 1, 0
    %vm143 = vcmp.eq.s32.totalorder %v142, 1
    %vm144 = vmand %vm140, %vm143
    %v145 = vadd.f32 %v120, %v125
    %v146 = vsel %vm144, %v145, 0.0
    %v147 = vrot.slane %v146, 4
    %v148 = vadd.f32 %v146, %v147
    %v149 = vrot.slane %v148, 2
    %v150 = vadd.f32 %v148, %v149
    %v151 = vrot.slane %v150, 1
    %v152 = vadd.f32 %v150, %v151
    %v153 = vld [vmem:[#allocation2] sm:$0x1]
    %v154 = vadd.f32 %v153, %v152
    %155 = vst [vmem:[#allocation2] sm:$0x1] %v154
    // Predicated region
    $region22: #{tpu_custom_call.1} parent=1 // pred_check
      _
    $region23: #{tpu_custom_call.1} parent=1 // pred_check_branch
      %157 = sbr.rel (0) target = $region25
    $region24: #{tpu_custom_call.1} parent=1 // pred_region
      %159 = vsyncadd [#allocation3], 0
      %s161 = sshll.u32 [#allocation2], 4
      %s162 = int_to_ptr.vmem [resolvable:$true] %s161
      %s163 = sshll.u32 %s4, 4
      %s164 = int_to_ptr.hbm [resolvable:$true] %s163
      %166 = dma.vmem_to_hbm [thread:$0]  %s162, 16, %s164, [#allocation3]
    $region25: #{tpu_custom_call.1} parent=1 // pred_fallthru
      _
    // Predicated region
    $region26: #{tpu_custom_call.1} parent=1 // pred_check
      _
    $region27: #{tpu_custom_call.1} parent=1 // pred_check_branch
      %168 = sbr.rel (0) target = $region29
    $region28: #{tpu_custom_call.1} parent=1 // pred_region
      %170 = dma.done [#allocation3], 16
    $region29: #{tpu_custom_call.1} parent=1 // pred_fallthru
      _
    %171 = vsyncpa [#allocation3], 1

</llo_original>
